<compile_context>
chip_gen: v7x
topology: tpu7x:2x2x1
jax: 0.10.0
libtpu: 0.0.40
codegen_flags: <defaults>
</compile_context>

<pallas_src>
import functools

import jax
import jax.numpy as jnp
from jax.experimental import pallas as pl
from jax.experimental.pallas import tpu as pltpu


def _dice_sums_kernel(pred_ref, tgt_ref, out_ref, acc_ref, *,
                      hw, tile, tiles_per_stream, needs_mask):
    """Accumulate per-class (intersection, pred_sum, target_sum) over HW tiles."""
    s = pl.program_id(1)                           # stream within the HW extent
    j = pl.program_id(2)                           # tile within the stream
    global_tile = s * tiles_per_stream + j         # unclamped global tile index

    x = pred_ref[...].astype(jnp.float32)          # (C, TILE) logits
    t = tgt_ref[...].astype(jnp.int32)             # (1, TILE) class ids
    C, TP = x.shape

    def partials(mask_tail):
        # Softmax over the channel (sublane) axis; per-lane, so garbage lanes
        # (tail padding / clamped OOB tiles) cannot contaminate valid lanes.
        m = jnp.max(x, axis=0, keepdims=True)
        e = jnp.exp(x - m)
        ssum = jnp.sum(e, axis=0, keepdims=True)
        p = e * pl.reciprocal(ssum, approx=True)   # EUP slot; frees the VALU
        class_ids = jax.lax.broadcasted_iota(jnp.int32, (C, TP), 0)
        match = t == class_ids                     # (C, TILE) boolean one-hot
        if mask_tail:
            # Scalar offset math; single vector compare per tile.
            remaining = hw - global_tile * tile
            lane = jax.lax.broadcasted_iota(jnp.int32, (1, TP), 1)
            valid = lane < remaining
            p = jnp.where(valid, p, 0.0)
            match = match & valid
        inter = jnp.sum(jnp.where(match, p, 0.0), axis=1)     # (C,)
        psum = jnp.sum(p, axis=1)                              # (C,)
        tsum = jnp.sum(match.astype(jnp.float32), axis=1)      # (C,)
        return jnp.stack([inter, psum, tsum], axis=0)          # (3, C)

    @pl.when(j == 0)
    def _():
        acc_ref[...] = jnp.zeros_like(acc_ref)

    if needs_mask:
        # Only tiles at/after the last fully-valid tile ever need the mask.
        num_full = hw // tile
        is_tail = global_tile >= num_full

        @pl.when(is_tail)
        def _():
            acc_ref[...] += partials(True)

        @pl.when(jnp.logical_not(is_tail))
        def _():
            acc_ref[...] += partials(False)
    else:
        acc_ref[...] += partials(False)

    # Write the per-(image, stream) output slab only once, on the last tile.
    @pl.when(j == pl.num_programs(2) - 1)
    def _():
        out_ref[...] = acc_ref[...]


def _choose_tile_hw(hw, c, per_block_bytes=1 * 1024 * 1024):
    """Pick a lane tile so each f32 pred block is ~1 MiB.

    DMA efficiency plateaus past ~1 MiB blocks, while the double-buffered
    inputs plus Mosaic's (C, TILE) f32 elementwise temporaries stay far under
    the scoped-VMEM limit on every generation (incl. v7x's 64 MiB per TC).
    """
    max_tile = max(128, (per_block_bytes // (c * 4)) // 128 * 128)
    if hw <= max_tile:
        return hw            # single block over the full spatial extent (always legal)
    return max_tile          # multiple of 128; tail tile is masked in-kernel


def dice_loss_pallas(pred, target, smooth=1e-05, tile_hw=None, num_streams=2):
    """pred: (N, C, H, W) float logits; target: (N, H, W) integer class indices."""
    N, C, H, W = pred.shape
    HW = H * W

    # Free reshapes (no HBM copy / transpose): C on sublanes, H*W on lanes.
    # Dtypes pass straight through (bf16 logits / int8 targets halve HBM
    # traffic on mem-bound v5e/v6e); casts happen per-tile in the kernel.
    pred_r = pred.reshape(N, C, HW)
    tgt_r = target.reshape(N, 1, HW)

    if tile_hw is None:
        tile_hw = _choose_tile_hw(HW, C)
    num_hw_tiles = pl.cdiv(HW, tile_hw)

    # Split HW tiles into independent parallel streams (v7x megacore); never
    # more streams than tiles.
    num_streams = max(1, min(num_streams, num_hw_tiles))
    tiles_per_stream = pl.cdiv(num_hw_tiles, num_streams)
    # Masking is only needed when the padded tiling over-covers HW.
    needs_mask = (num_streams * tiles_per_stream * tile_hw) != HW

    def hw_block(n, s, j):
        g = s * tiles_per_stream + j
        # Clamp fully out-of-range tiles of the last stream onto a valid block;
        # their contribution is zeroed by the in-kernel mask.
        return (n, 0, jnp.minimum(g, num_hw_tiles - 1))

    kernel = functools.partial(
        _dice_sums_kernel, hw=HW, tile=tile_hw,
        tiles_per_stream=tiles_per_stream, needs_mask=needs_mask)

    sums = pl.pallas_call(
        kernel,
        out_shape=jax.ShapeDtypeStruct((N, num_streams, 3, C), jnp.float32),
        grid_spec=pltpu.PrefetchScalarGridSpec(
            num_scalar_prefetch=0,
            grid=(N, num_streams, tiles_per_stream),
            in_specs=[
                pl.BlockSpec((None, C, tile_hw), hw_block),
                pl.BlockSpec((None, 1, tile_hw), hw_block),
            ],
            out_specs=pl.BlockSpec((None, None, 3, C), lambda n, s, j: (n, s, 0, 0)),
            scratch_shapes=[pltpu.VMEM((3, C), jnp.float32)],
        ),
        compiler_params=pltpu.CompilerParams(
            dimension_semantics=("parallel", "parallel", "arbitrary"),
            vmem_limit_bytes=32 * 1024 * 1024,
        ),
    )(pred_r, tgt_r)

    total = jnp.sum(sums, axis=(0, 1))             # (3, C): reduce per-image/stream slabs
    intersection, pred_sum, target_sum = total[0], total[1], total[2]
    dice = (2.0 * intersection + smooth) / (pred_sum + target_sum + smooth)
    return 1.0 - jnp.mean(dice)


def dice_loss_ref(pred, target, smooth=1e-05):
    """Pure-JAX reference mirroring the PyTorch code."""
    p = jax.nn.softmax(pred, axis=1)
    C = pred.shape[1]
    dices = []
    for c in range(C):
        pred_c = p[:, c]
        target_c = (target == c).astype(jnp.float32)
        inter = jnp.sum(pred_c * target_c)
        dices.append((2.0 * inter + smooth)
                     / (jnp.sum(pred_c) + jnp.sum(target_c) + smooth))
    return 1.0 - jnp.mean(jnp.stack(dices))


if __name__ == "__main__":
    key = jax.random.PRNGKey(0)
    k_pred, k_tgt = jax.random.split(key)

    # Tolerance is loosened because the kernel uses the EUP approximate
    # reciprocal for the softmax denominator (per perf review); dice loss
    # easily tolerates this.
    TOL = 1e-2

    # 1) Single-tile fast path (no masking, one stream).
    N, C, H, W = 2, 4, 16, 16
    pred = jax.random.normal(k_pred, (N, C, H, W), dtype=jnp.float32)
    target = jax.random.randint(k_tgt, (N, H, W), 0, C, dtype=jnp.int32)
    loss = jax.block_until_ready(dice_loss_pallas(pred, target))
    ref = dice_loss_ref(pred, target)
    assert jnp.allclose(loss, ref, atol=TOL, rtol=TOL), (loss, ref)

    # 2) Two streams, one tile each; second tile is a partial (masked) tail.
    H2, W2 = 12, 12                         # HW = 144 -> tiles of 128 + 16
    pred2 = jax.random.normal(k_pred, (N, C, H2, W2), dtype=jnp.float32)
    target2 = jax.random.randint(k_tgt, (N, H2, W2), 0, C, dtype=jnp.int32)
    loss2 = jax.block_until_ready(dice_loss_pallas(pred2, target2, tile_hw=128))
    ref2 = dice_loss_ref(pred2, target2)
    assert jnp.allclose(loss2, ref2, atol=TOL, rtol=TOL), (loss2, ref2)

    # 3) Odd tile count: stream 1 owns a fully out-of-range (clamped+masked)
    #    tile; also exercises bf16 logit pass-through.
    H3, W3 = 16, 24                         # HW = 384 -> 3 tiles of 128
    pred3 = jax.random.normal(k_pred, (N, C, H3, W3), dtype=jnp.float32)
    target3 = jax.random.randint(k_tgt, (N, H3, W3), 0, C, dtype=jnp.int32)
    pred3_bf16 = pred3.astype(jnp.bfloat16)
    loss3 = jax.block_until_ready(dice_loss_pallas(pred3_bf16, target3, tile_hw=128))
    ref3 = dice_loss_ref(pred3_bf16.astype(jnp.float32), target3)
    assert jnp.allclose(loss3, ref3, atol=TOL, rtol=TOL), (loss3, ref3)

    print("KERNEL_OK")
</pallas_src>

<mosaic_0001>
module attributes {stable_mosaic.version = 11 : i64} {
  func.func @_dice_sums_kernel(%arg0: i32, %arg1: i32, %arg2: i32, %arg3: memref<1x4x256xf32, #tpu.memory_space<vmem>>, %arg4: memref<1x1x256xi32, #tpu.memory_space<vmem>>, %arg5: memref<1x1x3x4xf32, #tpu.memory_space<vmem>>, %arg6: memref<3x4xf32, #tpu.memory_space<vmem>>) attributes {dimension_semantics = [#tpu.dimension_semantics<parallel>, #tpu.dimension_semantics<parallel>, #tpu.dimension_semantics<arbitrary>], iteration_bounds = array<i64: 2, 1, 1>, scalar_prefetch = 0 : i64, scratch_operands = 1 : i64, tpu.core_type = #tpu.core_type<tc>, window_params = [{transform_indices = @transform_0, window_bounds = array<i64: 1, 4, 256>}, {transform_indices = @transform_1, window_bounds = array<i64: 1, 1, 256>}, {transform_indices = @transform_2, window_bounds = array<i64: 1, 1, 3, 4>}]} {
    %c0 = arith.constant 0 : index
    %c0_0 = arith.constant 0 : index
    %c0_1 = arith.constant 0 : index
    %0 = vector.load %arg3[%c0, %c0_0, %c0_1] : memref<1x4x256xf32, #tpu.memory_space<vmem>>, vector<1x4x256xf32>
    %1 = vector.shape_cast %0 : vector<1x4x256xf32> to vector<4x256xf32>
    %c0_2 = arith.constant 0 : index
    %c0_3 = arith.constant 0 : index
    %c0_4 = arith.constant 0 : index
    %2 = vector.load %arg4[%c0_2, %c0_3, %c0_4] : memref<1x1x256xi32, #tpu.memory_space<vmem>>, vector<1x1x256xi32>
    %3 = vector.shape_cast %2 : vector<1x1x256xi32> to vector<1x256xi32>
    %c0_i32 = arith.constant 0 : i32
    %4 = arith.cmpi eq, %arg2, %c0_i32 : i32
    %5 = arith.extui %4 : i1 to i32
    %c0_i32_5 = arith.constant 0 : i32
    %6 = arith.cmpi ne, %5, %c0_i32_5 : i32
    scf.if %6 {
      %cst_17 = arith.constant 0.000000e+00 : f32
      %37 = vector.broadcast %cst_17 : f32 to vector<3x4xf32>
      %c0_18 = arith.constant 0 : index
      %c0_19 = arith.constant 0 : index
      %38 = vector.load %arg6[%c0_18, %c0_19] : memref<3x4xf32, #tpu.memory_space<vmem>>, vector<3x4xf32>
      tpu.vector_store %arg6[%c0_18, %c0_19], %37 {strides = array<i32>} : memref<3x4xf32, #tpu.memory_space<vmem>>, vector<3x4xf32>,
    } else {
    }
    %c0_6 = arith.constant 0 : index
    %c0_7 = arith.constant 0 : index
    %7 = vector.load %arg6[%c0_6, %c0_7] : memref<3x4xf32, #tpu.memory_space<vmem>>, vector<3x4xf32>
    %cst = arith.constant dense<0xFF800000> : vector<256xf32>
    %8 = vector.multi_reduction <maximumf>, %1, %cst [0] : vector<4x256xf32> to vector<256xf32>
    %9 = vector.shape_cast %8 : vector<256xf32> to vector<1x256xf32>
    %10 = vector.broadcast %9 : vector<1x256xf32> to vector<4x256xf32>
    %11 = arith.subf %1, %10 : vector<4x256xf32>
    %12 = math.exp %11 : vector<4x256xf32>
    %cst_8 = arith.constant dense<0.000000e+00> : vector<256xf32>
    %13 = vector.multi_reduction <add>, %12, %cst_8 [0] : vector<4x256xf32> to vector<256xf32>
    %14 = vector.shape_cast %13 : vector<256xf32> to vector<1x256xf32>
    %15 = tpu.reciprocal %14 {approx = true} : vector<1x256xf32> -> vector<1x256xf32>
    %16 = vector.broadcast %15 : vector<1x256xf32> to vector<4x256xf32>
    %17 = arith.mulf %12, %16 : vector<4x256xf32>
    %18 = tpu.iota {dimensions = array<i32: 0>} : vector<4x256xi32>
    %19 = vector.broadcast %3 : vector<1x256xi32> to vector<4x256xi32>
    %20 = arith.cmpi eq, %19, %18 : vector<4x256xi32>
    %cst_9 = arith.constant 0.000000e+00 : f32
    %21 = vector.broadcast %cst_9 : f32 to vector<4x256xf32>
    %22 = arith.select %20, %17, %21 : vector<4x256xi1>, vector<4x256xf32>
    %cst_10 = arith.constant dense<0.000000e+00> : vector<4xf32>
    %23 = vector.multi_reduction <add>, %22, %cst_10 [1] : vector<4x256xf32> to vector<4xf32>
    %cst_11 = arith.constant dense<0.000000e+00> : vector<4xf32>
    %24 = vector.multi_reduction <add>, %17, %cst_11 [1] : vector<4x256xf32> to vector<4xf32>
    %25 = arith.extui %20 : vector<4x256xi1> to vector<4x256xi32>
    %26 = arith.sitofp %25 : vector<4x256xi32> to vector<4x256xf32>
    %cst_12 = arith.constant dense<0.000000e+00> : vector<4xf32>
    %27 = vector.multi_reduction <add>, %26, %cst_12 [1] : vector<4x256xf32> to vector<4xf32>
    %28 = vector.shape_cast %23 : vector<4xf32> to vector<1x4xf32>
    %29 = vector.shape_cast %24 : vector<4xf32> to vector<1x4xf32>
    %30 = vector.shape_cast %27 : vector<4xf32> to vector<1x4xf32>
    %31 = tpu.concatenate %28, %29, %30 in 0 : vector<1x4xf32>, vector<1x4xf32>, vector<1x4xf32> -> vector<3x4xf32>
    %32 = arith.addf %7, %31 : vector<3x4xf32>
    %c0_13 = arith.constant 0 : index
    %c0_14 = arith.constant 0 : index
    %33 = vector.load %arg6[%c0_13, %c0_14] : memref<3x4xf32, #tpu.memory_space<vmem>>, vector<3x4xf32>
    tpu.vector_store %arg6[%c0_13, %c0_14], %32 {strides = array<i32>} : memref<3x4xf32, #tpu.memory_space<vmem>>, vector<3x4xf32>,
    %c0_i32_15 = arith.constant 0 : i32
    %34 = arith.cmpi eq, %arg2, %c0_i32_15 : i32
    %35 = arith.extui %34 : i1 to i32
    %c0_i32_16 = arith.constant 0 : i32
    %36 = arith.cmpi ne, %35, %c0_i32_16 : i32
    scf.if %36 {
      %c0_17 = arith.constant 0 : index
      %c0_18 = arith.constant 0 : index
      %37 = vector.load %arg6[%c0_17, %c0_18] : memref<3x4xf32, #tpu.memory_space<vmem>>, vector<3x4xf32>
      %c0_19 = arith.constant 0 : index
      %c0_20 = arith.constant 0 : index
      %c0_21 = arith.constant 0 : index
      %c0_22 = arith.constant 0 : index
      %38 = vector.load %arg5[%c0_19, %c0_20, %c0_21, %c0_22] : memref<1x1x3x4xf32, #tpu.memory_space<vmem>>, vector<1x1x3x4xf32>
      %39 = vector.shape_cast %38 : vector<1x1x3x4xf32> to vector<3x4xf32>
      %40 = vector.shape_cast %37 : vector<3x4xf32> to vector<1x1x3x4xf32>
      tpu.vector_store %arg5[%c0_19, %c0_20, %c0_21, %c0_22], %40 {strides = array<i32>} : memref<1x1x3x4xf32, #tpu.memory_space<vmem>>, vector<1x1x3x4xf32>,
    } else {
    }
    return
  }
  func.func @transform_0(%arg0: i32, %arg1: i32, %arg2: i32) -> (i32, i32, i32) {
    %c1_i32 = arith.constant 1 : i32
    %0 = arith.muli %arg1, %c1_i32 : i32
    %1 = arith.addi %0, %arg2 : i32
    %c0_i32 = arith.constant 0 : i32
    %2 = arith.minsi %1, %c0_i32 : i32
    %c0_i32_0 = arith.constant 0 : i32
    %c0_i32_1 = arith.constant 0 : i32
    return %arg0, %c0_i32_0, %2 : i32, i32, i32
  }
  func.func @transform_1(%arg0: i32, %arg1: i32, %arg2: i32) -> (i32, i32, i32) {
    %c1_i32 = arith.constant 1 : i32
    %0 = arith.muli %arg1, %c1_i32 : i32
    %1 = arith.addi %0, %arg2 : i32
    %c0_i32 = arith.constant 0 : i32
    %2 = arith.minsi %1, %c0_i32 : i32
    %c0_i32_0 = arith.constant 0 : i32
    %c0_i32_1 = arith.constant 0 : i32
    return %arg0, %c0_i32_0, %2 : i32, i32, i32
  }
  func.func @transform_2(%arg0: i32, %arg1: i32, %arg2: i32) -> (i32, i32, i32, i32) {
    %c0_i32 = arith.constant 0 : i32
    %c0_i32_0 = arith.constant 0 : i32
    %c0_i32_1 = arith.constant 0 : i32
    return %arg0, %arg1, %c0_i32, %c0_i32_0 : i32, i32, i32, i32
  }
}

</mosaic_0001>

<llo_original>
// kernel: tpu_custom_call.1
$region0: #{tpu_custom_call.1}
  #allocation0 [shape = 'u32[]', space=smem, size = 0x4, offset = 0x4, fixed_abs, tag = 'smem constant byte address 0x4 - core index']
  #allocation1 [shape = 'u32[144,128]{1,0:T(1,128)}', space=vmem, size = 0x12000, scoped, tag = 'internal scratch']
  #allocation2 [shape = 'f32[3,4]{1,0:T(4,128)}', space=vmem, size = 0x800, scoped, tag = 'scratch operand']
  %s0 = inlined_call_operand.hbm [shape: f32[2,4,256], index: 0, kind: input, shape index: {}]
  %s1 = inlined_call_operand.hbm [shape: s32[2,1,256], index: 1, kind: input, shape index: {}]
  %s2 = inlined_call_operand.vmem [shape: f32[2,1,3,4], index: 2, kind: output, shape index: {}]
  %s3 = sld [smem:[#allocation0]]
  $region57: #{tpu_custom_call.1} parent=0
    _
  %s5 = ssub.s32 1, %s3
  %s6 = scalar_select 0, %s5, %s3
  $region1: #{tpu_custom_call.1} parent=0
    #allocation3 [shape = 'u8[8192]{0}', space=vmem, size = 0x2000, scoped, tag = 'input window, operand 0']
    #allocation4 [shape = 's32[2]{0}', space=sflag, size = 0x8, scoped, tag = 'scoped memory for tpu_custom_call.1']
    #allocation5 [shape = 'u8[2048]{0}', space=vmem, size = 0x800, scoped, tag = 'input window, operand 1']
    #allocation6 [shape = 's32[2]{0}', space=sflag, size = 0x8, scoped, tag = 'scoped memory for tpu_custom_call.1']
    %7 = vsyncpa [#allocation4], 0
    %s8 = scalar_lea.sflag [#allocation4], 1
    %9 = vsyncpa %s8, 0
    %10 = vsyncpa [#allocation6], 0
    %s11 = scalar_lea.sflag [#allocation6], 1
    %12 = vsyncpa %s11, 0
    loop: start=0, step=1, limit=4
    $region2: #{tpu_custom_call.1} parent=1 // loop_pre_header
      _
    $region3: #{tpu_custom_call.1} parent=1 // loop_header
      %s14 = sphi 0, %s18
      %p15 = scmp.ge.s32.totalorder %s14, 4
      %s21 = sphi 0, %s40
      %s22 = sphi 0, %s36
      %s23 = sphi 0, %s32
      %s24 = sphi 0, %s21
      %s25 = sphi 0, %s22
      %s26 = sphi 0, %s23
      %s27 = sphi 0, %s24
      %s28 = sphi 0, %s25
      %s29 = sphi 0, %s26
      %s51 = sphi 0, %s53
      %s54 = sphi 0, %s51
      %s55 = sphi 0, %s54
      %s71 = sphi 0, %s55
      %s85 = sphi 0, %s87
      %s88 = sphi 0, %s85
      %s89 = sphi 0, %s88
      %s105 = sphi 0, %s89
      %s113 = sphi 0, %s115
      %s116 = sphi 0, %s113
      %s117 = sphi 0, %s116
      %s133 = sphi 0, %s117
    $region4: #{tpu_custom_call.1} parent=1 // loop_header_branch
      %17 = sbr.rel (%p15) target = $region8
    $region5: #{tpu_custom_call.1} parent=1 // loop_body
      %s19 = ssub.s32 %s14, 1
      %s20 = ssub.s32 %s14, 2
      %s30 = sadd.s32 1, %s23
      %p31 = scmp.ge.s32.totalorder %s30, 1
      %s32 = scalar_select %p31, 0, %s30
      %s33 = sadd.s32 1, %s22
      %s34 = scalar_select %p31, %s33, %s22
      %p35 = scmp.ge.s32.totalorder %s34, 1
      %s36 = scalar_select %p35, 0, %s34
      %s37 = sadd.s32 1, %s21
      %s38 = scalar_select %p35, %s37, %s21
      %p39 = scmp.ge.s32.totalorder %s38, 2
      %s40 = scalar_select %p39, 0, %s38
      %s41 = sadd.s32 %s22, %s23
      %p42 = scmp.lt.s32.totalorder %s41, 0
      %s43 = scalar_select %p42, %s41, 0
      %s44 = sadd.s32 %s36, %s32
      %p45 = scmp.lt.s32.totalorder %s44, 0
      %s46 = scalar_select %p45, %s44, 0
      %s47 = ssub.s32 %s21, %s40
      %s48 = ssub.s32 %s43, %s46
      %s49 = sor.u32 %s47, %s48
      %p50 = scmp.eq.s32.totalorder %s49, 0
      %s52 = sadd.s32 %s51, 1
      %s53 = scalar_select %p50, %s51, %s52
      %p56 = pneg %p50
      %p57 = scmp.eq.s32.totalorder %s14, 1
      %p58 = por %p56, %p57
      %p59 = scmp.ne.s32.totalorder %s51, %s54
      %p60 = scmp.eq.s32.totalorder %s14, 0
      %p61 = por %p59, %p60
      %p62 = scmp.ne.s32.totalorder %s51, %s54
      %p63 = scmp.eq.s32.totalorder %s19, 1
      %p64 = por %p62, %p63
      %p65 = scmp.ne.s32.totalorder %s54, %s55
      %p66 = scmp.eq.s32.totalorder %s19, 0
      %p67 = por %p65, %p66
      %p68 = scmp.ne.s32.totalorder %s54, %s55
      %p69 = scmp.eq.s32.totalorder %s20, 1
      %p70 = por %p68, %p69
      %p72 = scmp.ne.s32.totalorder %s55, %s71
      %p73 = scmp.eq.s32.totalorder %s20, 0
      %p74 = por %p72, %p73
      %s75 = sadd.s32 %s22, %s23
      %p76 = scmp.lt.s32.totalorder %s75, 0
      %s77 = scalar_select %p76, %s75, 0
      %s78 = sadd.s32 %s36, %s32
      %p79 = scmp.lt.s32.totalorder %s78, 0
      %s80 = scalar_select %p79, %s78, 0
      %s81 = ssub.s32 %s21, %s40
      %s82 = ssub.s32 %s77, %s80
      %s83 = sor.u32 %s81, %s82
      %p84 = scmp.eq.s32.totalorder %s83, 0
      %s86 = sadd.s32 %s85, 1
      %s87 = scalar_select %p84, %s85, %s86
      %p90 = pneg %p84
      %p91 = scmp.eq.s32.totalorder %s14, 1
      %p92 = por %p90, %p91
      %p93 = scmp.ne.s32.totalorder %s85, %s88
      %p94 = scmp.eq.s32.totalorder %s14, 0
      %p95 = por %p93, %p94
      %p96 = scmp.ne.s32.totalorder %s85, %s88
      %p97 = scmp.eq.s32.totalorder %s19, 1
      %p98 = por %p96, %p97
      %p99 = scmp.ne.s32.totalorder %s88, %s89
      %p100 = scmp.eq.s32.totalorder %s19, 0
      %p101 = por %p99, %p100
      %p102 = scmp.ne.s32.totalorder %s88, %s89
      %p103 = scmp.eq.s32.totalorder %s20, 1
      %p104 = por %p102, %p103
      %p106 = scmp.ne.s32.totalorder %s89, %s105
      %p107 = scmp.eq.s32.totalorder %s20, 0
      %p108 = por %p106, %p107
      %s109 = ssub.s32 %s21, %s40
      %s110 = ssub.s32 %s22, %s36
      %s111 = sor.u32 %s109, %s110
      %p112 = scmp.eq.s32.totalorder %s111, 0
      %s114 = sadd.s32 %s113, 1
      %s115 = scalar_select %p112, %s113, %s114
      %p118 = pneg %p112
      %p119 = scmp.eq.s32.totalorder %s14, 1
      %p120 = por %p118, %p119
      %p121 = scmp.ne.s32.totalorder %s113, %s116
      %p122 = scmp.eq.s32.totalorder %s14, 0
      %p123 = por %p121, %p122
      %p124 = scmp.ne.s32.totalorder %s113, %s116
      %p125 = scmp.eq.s32.totalorder %s19, 1
      %p126 = por %p124, %p125
      %p127 = scmp.ne.s32.totalorder %s116, %s117
      %p128 = scmp.eq.s32.totalorder %s19, 0
      %p129 = por %p127, %p128
      %p130 = scmp.ne.s32.totalorder %s116, %s117
      %p131 = scmp.eq.s32.totalorder %s20, 1
      %p132 = por %p130, %p131
      %p134 = scmp.ne.s32.totalorder %s117, %s133
      %p135 = scmp.eq.s32.totalorder %s20, 0
      %p136 = por %p134, %p135
      %p137 = scmp.le.s32.totalorder 1, %s14
      %p138 = scmp.lt.s32.totalorder %s14, 3
      %p139 = pnand %p137, %p138
      %p140 = pneg %p139
      // Predicated region
      $region9: #{tpu_custom_call.1} parent=5 // pred_check
        _
      $region10: #{tpu_custom_call.1} parent=5 // pred_check_branch
        %142 = sbr.rel (%p139) target = $region12
      $region11: #{tpu_custom_call.1} parent=5 // pred_region
        %s143 = ssub.s32 %s14, 1
      $region12: #{tpu_custom_call.1} parent=5 // pred_fallthru
        _
      %p144 = scmp.lt.s32.totalorder %s14, 2
      // Predicated region
      $region13: #{tpu_custom_call.1} parent=5 // pred_check
        %p145 = pneg %p144
      $region14: #{tpu_custom_call.1} parent=5 // pred_check_branch
        %147 = sbr.rel (%p145) target = $region16
      $region15: #{tpu_custom_call.1} parent=5 // pred_region
        // Predicated region
        $region17: #{tpu_custom_call.1} parent=15 // pred_check
          %p148 = pneg %p61
        $region18: #{tpu_custom_call.1} parent=15 // pred_check_branch
          %150 = sbr.rel (%p148) target = $region20
        $region19: #{tpu_custom_call.1} parent=15 // pred_region
          %s151 = sand.u32 %s51, 1
          %s152 = scalar_lea.sflag [#allocation4], %s151
          %s153 = sand.u32 %s51, 1
          %s154 = smul.addr %s153, 8
          %s155 = scalar_lea.vmem [#allocation3], %s154
          %s156 = sadd.s32 %s22, %s23
          %p157 = scmp.lt.s32.totalorder %s156, 0
          %s158 = scalar_select %p157, %s156, 0
          %s159 = smul.u32 2, %s158
          %s161 = ssub.s32 128, 128
          %162 = vsyncadd %s152, %s161
          %s163 = smul.addr %s21, 2
          %s164 = sadd.s32 %s159, %s163
          %s165 = smul.addr %s164, 64
          %s166 = scalar_lea.hbm %s0, %s165
          %s168 = sshll.u32 %s155, 4
          %s169 = int_to_ptr.vmem [resolvable:$true] %s168
          %171 = dma.hbm_to_vmem [thread:$0]  %s166, 128, %s169, %s152
        $region20: #{tpu_custom_call.1} parent=15 // pred_fallthru
          _
        // Predicated region
        $region21: #{tpu_custom_call.1} parent=15 // pred_check
          %p172 = pneg %p95
        $region22: #{tpu_custom_call.1} parent=15 // pred_check_branch
          %174 = sbr.rel (%p172) target = $region24
        $region23: #{tpu_custom_call.1} parent=15 // pred_region
          %s175 = sand.u32 %s85, 1
          %s176 = scalar_lea.sflag [#allocation6], %s175
          %s177 = sand.u32 %s85, 1
          %s178 = smul.addr %s177, 2
          %s179 = scalar_lea.vmem [#allocation5], %s178
          %s180 = sadd.s32 %s22, %s23
          %p181 = scmp.lt.s32.totalorder %s180, 0
          %s182 = scalar_select %p181, %s180, 0
          %s183 = smul.u32 2, %s182
          %s185 = ssub.s32 32, 32
          %186 = vsyncadd %s176, %s185
          %s187 = smul.addr %s21, 2
          %s188 = sadd.s32 %s183, %s187
          %s189 = smul.addr %s188, 16
          %s190 = scalar_lea.hbm %s1, %s189
          %s192 = sshll.u32 %s179, 4
          %s193 = int_to_ptr.vmem [resolvable:$true] %s192
          %195 = dma.hbm_to_vmem [thread:$0]  %s190, 32, %s193, %s176
        $region24: #{tpu_custom_call.1} parent=15 // pred_fallthru
          _
      $region16: #{tpu_custom_call.1} parent=5 // pred_fallthru
        _
      %p196 = scmp.le.s32.totalorder 1, %s14
      %p197 = scmp.lt.s32.totalorder %s14, 3
      %p198 = pnand %p196, %p197
      %p199 = pneg %p198
      // Predicated region
      $region25: #{tpu_custom_call.1} parent=5 // pred_check
        _
      $region26: #{tpu_custom_call.1} parent=5 // pred_check_branch
        %201 = sbr.rel (%p198) target = $region28
      $region27: #{tpu_custom_call.1} parent=5 // pred_region
        %s202 = ssub.s32 %s14, 1
        %s203 = sand.u32 %s54, 1
        %s204 = scalar_lea.sflag [#allocation4], %s203
        %s205 = sand.u32 %s54, 1
        %s206 = smul.addr %s205, 8
        %s207 = scalar_lea.vmem [#allocation3], %s206
        // Predicated region
        $region29: #{tpu_custom_call.1} parent=27 // pred_check
          %p208 = pneg %p67
        $region30: #{tpu_custom_call.1} parent=27 // pred_check_branch
          %210 = sbr.rel (%p208) target = $region32
        $region31: #{tpu_custom_call.1} parent=27 // pred_region
          %211 = dma.done %s204, 128
        $region32: #{tpu_custom_call.1} parent=27 // pred_fallthru
          _
        %s212 = sand.u32 %s88, 1
        %s213 = scalar_lea.sflag [#allocation6], %s212
        %s214 = sand.u32 %s88, 1
        %s215 = smul.addr %s214, 2
        %s216 = scalar_lea.vmem [#allocation5], %s215
        // Predicated region
        $region33: #{tpu_custom_call.1} parent=27 // pred_check
          %p217 = pneg %p101
        $region34: #{tpu_custom_call.1} parent=27 // pred_check_branch
          %219 = sbr.rel (%p217) target = $region36
        $region35: #{tpu_custom_call.1} parent=27 // pred_region
          %220 = dma.done %s213, 32
        $region36: #{tpu_custom_call.1} parent=27 // pred_fallthru
          _
        %s221 = sand.u32 %s54, 1
        %s222 = scalar_lea.sflag [#allocation4], %s221
        %s223 = sand.u32 %s54, 1
        %s224 = smul.addr %s223, 8
        %s225 = scalar_lea.vmem [#allocation3], %s224
        %p226 = pneg %p67
        %p227 = pneg %p64
        %s228 = sand.u32 %s88, 1
        %s229 = scalar_lea.sflag [#allocation6], %s228
        %s230 = sand.u32 %s88, 1
        %s231 = smul.addr %s230, 2
        %s232 = scalar_lea.vmem [#allocation5], %s231
        %p233 = pneg %p101
        %p234 = pneg %p98
        %p235 = pneg %p129
        %p236 = pneg %p126
        %p237 = scmp.lt.s32.totalorder %s24, 1
        %s238 = scalar_select %p237, %s24, 1
        %p239 = scmp.lt.s32.totalorder %s25, 0
        %s240 = scalar_select %p239, %s25, 0
        %s241 = sadd.s32 %s240, %s238
        %s242 = smul.addr %s241, 4
        %s243 = scalar_lea.vmem %s2, %s242
        %s244 = sadd.s32 %s25, %s26
        %p245 = scmp.lt.s32.totalorder %s244, 0
        %s246 = scalar_select %p245, %s244, 0
        %s247 = smul.u32 2, %s246
        %s248 = sadd.s32 %s25, %s26
        %p249 = scmp.lt.s32.totalorder %s248, 0
        %s250 = scalar_select %p249, %s248, 0
        %s251 = smul.u32 2, %s250
        %p252 = scmp.lt.s32.totalorder %s24, 1
        %s253 = scalar_select %p252, %s24, 1
        %p254 = scmp.lt.s32.totalorder %s25, 0
        %s255 = scalar_select %p254, %s25, 0
        %s256 = sadd.s32 %s255, %s253
        %s257 = smul.addr %s256, 4
        %s258 = scalar_lea.vmem %s2, %s257
        %v259 = vld [vmem:[%s207] sm:$0xff]
        %v260 = vld [vmem:[%s216] sm:$0x3]
        %p261 = scmp.eq.s32.totalorder %s26, 0
        // Predicated region
        $region37: #{tpu_custom_call.1} parent=27 // pred_check
          %p262 = pneg %p261
        $region38: #{tpu_custom_call.1} parent=27 // pred_check_branch
          %264 = sbr.rel (%p262) target = $region40
        $region39: #{tpu_custom_call.1} parent=27 // pred_region
          %vm265 = vcmask 26624
          %266 = vst.msk [vmem:[#allocation2] sm:$0x7] %vm265, 0.0
        $region40: #{tpu_custom_call.1} parent=27 // pred_fallthru
          _
        %v267 = vld [vmem:[#allocation2] sm:$0x7]
        %v269 = vcombine.high %v259, %v259
        %vm271 = vcmask 1043456
        %v272 = vsel %vm271, %v259, -inf
        %v273 = vrot.slane %v272, 4
        %v274 = vmax.f32 %v272, %v273
        %v275 = vrot.slane %v274, 2
        %v276 = vmax.f32 %v274, %v275
        %v277 = vrot.slane %v276, 1
        %v278 = vmax.f32 %v276, %v277
        %v279 = vsel %vm271, %v269, -inf
        %v280 = vrot.slane %v279, 4
        %v281 = vmax.f32 %v279, %v280
        %v282 = vrot.slane %v281, 2
        %v283 = vmax.f32 %v281, %v282
        %v284 = vrot.slane %v283, 1
        %v285 = vmax.f32 %v283, %v284
        %v288 = vcombine.low %v278, %v285
        %v290 = vsub.f32 %v259, %v288
        %v291 = vmul.f32 %v290, 1.442695
        %v292 = vpow.pop %v291
        %v294 = vcombine.high %v292, %v292
        %v296 = vsel %vm271, %v292, 0.0
        %v297 = vrot.slane %v296, 4
        %v298 = vadd.f32 %v296, %v297
        %v299 = vrot.slane %v298, 2
        %v300 = vadd.f32 %v298, %v299
        %v301 = vrot.slane %v300, 1
        %v302 = vadd.f32 %v300, %v301
        %v303 = vsel %vm271, %v294, 0.0
        %v304 = vrot.slane %v303, 4
        %v305 = vadd.f32 %v303, %v304
        %v306 = vrot.slane %v305, 2
        %v307 = vadd.f32 %v305, %v306
        %v308 = vrot.slane %v307, 1
        %v309 = vadd.f32 %v307, %v308
        %v310 = vrcp.pop %v302
        %v311 = vrcp.pop %v309
        %v314 = vcombine.low %v310, %v311
        %v316 = vmul.f32 %v292, %v314
        %v317 = vlaneseq
        %v318 = vshrl.u32 %v317, 7
        %v319 = vlaneseq
        %v320 = vshrl.u32 %v319, 7
        %v321 = vsub.s32 0, %v320
        %v322 = vrot.slane %v260, %v321
        %v323 = vlaneseq
        %v324 = vshrl.u32 %v323, 7
        %v325 = vsub.s32 1, %v324
        %v326 = vrot.slane %v260, %v325
        %vm327 = vcmp.eq.s32.totalorder %v322, %v318
        %vm328 = vcmp.eq.s32.totalorder %v326, %v318
        %v330 = vcombine.high %v316, %v316
        %v332 = vsel %vm327, %v316, 0.0
        %v333 = vsel %vm328, %v330, 0.0
        %v334 = vsel %vm271, %v332, 0.0
        %v335 = vsel %vm271, %v333, 0.0
        %v336 = vadd.f32 %v334, %v335
        %337 = vadd.xlane.f32.xlu0 %v336
        %v338 = vpop.xlane.xlu0 %337
        %v339 = vsel %vm271, %v316, 0.0
        %v340 = vsel %vm271, %v330, 0.0
        %v341 = vadd.f32 %v339, %v340
        %342 = vadd.xlane.f32.xlu0 %v341
        %v343 = vpop.xlane.xlu0 %342
        %v344 = vsel %vm327, 1, 0
        %v345 = vsel %vm328, 1, 0
        %v346 = vcvt.s32.f32 %v344
        %v347 = vcvt.s32.f32 %v345
        %v348 = vsel %vm271, %v346, 0.0
        %v349 = vsel %vm271, %v347, 0.0
        %v350 = vadd.f32 %v348, %v349
        %351 = vadd.xlane.f32.xlu0 %v350
        %v352 = vpop.xlane.xlu0 %351
        %v354 = vlaneseq
        %v355 = vand.u32 %v354, 127
        %v356 = vlaneseq
        %v357 = vshrl.u32 %v356, 7
        %v358 = vsub.s32 %v355, %v357
        %v359 = vrot.slane %v338, %v358
        %v362 = vlaneseq
        %v363 = vshrl.u32 %v362, 7
        %v364 = vsub.s32 %v355, %v363
        %v365 = vrot.slane %v343, %v364
        %v368 = vlaneseq
        %v369 = vshrl.u32 %v368, 7
        %v370 = vsub.s32 %v355, %v369
        %v371 = vrot.slane %v352, %v370
        %vm373 = vcmask 1040384
        %v374 = vsel %vm373, %v359, %v365
        %vm375 = vcmask 1041408
        %v376 = vsel %vm375, %v374, %v371
        %v377 = vadd.f32 %v267, %v376
        %vm378 = vcmask 26624
        %379 = vst.msk [vmem:[#allocation2] sm:$0x7] %vm378, %v377
        // Predicated region
        $region41: #{tpu_custom_call.1} parent=27 // pred_check
          %p380 = pneg %p261
        $region42: #{tpu_custom_call.1} parent=27 // pred_check_branch
          %382 = sbr.rel (%p380) target = $region44
        $region43: #{tpu_custom_call.1} parent=27 // pred_region
          %v383 = vld [vmem:[#allocation2] sm:$0x7]
          %384 = vst.msk [vmem:[%s258] sm:$0x7] %vm378, %v383
        $region44: #{tpu_custom_call.1} parent=27 // pred_fallthru
          _
        %p385 = scmp.lt.s32.totalorder %s24, 1
        %s386 = scalar_select %p385, %s24, 1
        %p387 = scmp.lt.s32.totalorder %s25, 0
        %s388 = scalar_select %p387, %s25, 0
        %s389 = sadd.s32 %s388, %s386
        %s390 = smul.addr %s389, 4
        %s391 = scalar_lea.vmem %s2, %s390
        // Predicated region
        $region45: #{tpu_custom_call.1} parent=27 // pred_check
          %p392 = pneg %p126
        $region46: #{tpu_custom_call.1} parent=27 // pred_check_branch
          %394 = sbr.rel (%p392) target = $region48
        $region47: #{tpu_custom_call.1} parent=27 // pred_region
          _
        $region48: #{tpu_custom_call.1} parent=27 // pred_fallthru
          _
      $region28: #{tpu_custom_call.1} parent=5 // pred_fallthru
        _
      %p395 = scmp.le.s32.totalorder 2, %s14
      // Predicated region
      $region49: #{tpu_custom_call.1} parent=5 // pred_check
        %p396 = pneg %p395
      $region50: #{tpu_custom_call.1} parent=5 // pred_check_branch
        %398 = sbr.rel (%p396) target = $region52
      $region51: #{tpu_custom_call.1} parent=5 // pred_region
        %s399 = ssub.s32 %s14, 2
        // Predicated region
        $region53: #{tpu_custom_call.1} parent=51 // pred_check
          %p400 = pneg %p132
        $region54: #{tpu_custom_call.1} parent=51 // pred_check_branch
          %402 = sbr.rel (%p400) target = $region56
        $region55: #{tpu_custom_call.1} parent=51 // pred_region
          %p403 = scmp.lt.s32.totalorder %s27, 1
          %s404 = scalar_select %p403, %s27, 1
          %p405 = scmp.lt.s32.totalorder %s28, 0
          %s406 = scalar_select %p405, %s28, 0
          %s407 = sadd.s32 %s406, %s404
          %s408 = smul.addr %s407, 4
          %s409 = scalar_lea.vmem %s2, %s408
        $region56: #{tpu_custom_call.1} parent=51 // pred_fallthru
          _
      $region52: #{tpu_custom_call.1} parent=5 // pred_fallthru
        _
    $region6: #{tpu_custom_call.1} parent=1 // loop_footer
      %s18 = sadd.s32 1, %s14
    $region7: #{tpu_custom_call.1} parent=1 // loop_footer_branch
      %13 = sbr.rel target = $region3
    $region8: #{tpu_custom_call.1} parent=1 // loop_exit
      _
    %410 = vsyncpa [#allocation4], 1
    %s411 = scalar_lea.sflag [#allocation4], 1
    %412 = vsyncpa %s411, 1
    %413 = vsyncpa [#allocation6], 1
    %s414 = scalar_lea.sflag [#allocation6], 1
    %415 = vsyncpa %s414, 1

</llo_original>
